<compile_context>
chip_gen: v6e
topology: v6e:2x2x1
jax: 0.10.0
libtpu: 0.0.40
codegen_flags: <defaults>
</compile_context>

<pallas_src>
import functools

import jax
import jax.numpy as jnp
from jax import lax
from jax.experimental import pallas as pl
from jax.experimental.pallas import tpu as pltpu


# Minimum second-to-last tile multiple per element size (f32 / bf16 / int8).
_SUBLANE = {4: 8, 2: 16, 1: 32}


def _round_up(x, m):
    return ((x + m - 1) // m) * m


def _pick_h_tile(h, candidates=(512, 256, 128)):
    for c in candidates:
        if h % c == 0:
            return c
    # TODO(synk): H not a multiple of 128 uses the full dim as one tile; for
    # very large odd H a padded two-level tiling would be needed.
    return h


def _resblock_kernel_fused(x_ref, w_ref, b_ref, o_ref):
    # Single K tile and single N tile: x_ref is both the matmul LHS and the
    # residual, so x is read from HBM exactly once.
    x = x_ref[...]
    w = w_ref[...]
    xw = x.astype(w.dtype) if x.dtype != w.dtype else x
    # Contract x's last dim against the weight's last dim (= in_features), so
    # the PyTorch (out, in) layout is used as-is; accumulate in f32 on the MXU.
    h = lax.dot_general(
        xw, w,
        dimension_numbers=(((1,), (1,)), ((), ())),
        preferred_element_type=jnp.float32,
    )
    h = h + b_ref[...].astype(jnp.float32)
    silu = h * jax.nn.sigmoid(h)                     # sigmoid on the EUP
    o_ref[...] = (x.astype(jnp.float32) + silu).astype(o_ref.dtype)


def _resblock_kernel(x_ref, w_ref, b_ref, xres_ref, o_ref, acc_ref):
    # x_ref   : (tm, tk)  matmul LHS rows, K-slice of the hidden dim
    # w_ref   : (tn, tk)  PyTorch-layout weight tile (out_features, in_features)
    # b_ref   : (1,  tn)  bias slice
    # xres_ref: (tm, tn)  residual slice; block index depends only on (i, j),
    #                     so Pallas does not re-DMA it per k step
    # o_ref   : (tm, tn)  output tile
    # acc_ref : (tm, tn)  f32 accumulator scratch, resident across the k axis
    k = pl.program_id(2)

    @pl.when(k == 0)
    def _init():
        acc_ref[...] = jnp.zeros_like(acc_ref)

    x = x_ref[...]
    w = w_ref[...]
    if x.dtype != w.dtype:           # trace-time branch: cast LHS to weight dtype
        x = x.astype(w.dtype)
    acc_ref[...] += lax.dot_general(
        x, w,
        dimension_numbers=(((1,), (1,)), ((), ())),
        preferred_element_type=jnp.float32,
    )

    @pl.when(k == pl.num_programs(2) - 1)
    def _finalize():
        h = acc_ref[...] + b_ref[...].astype(jnp.float32)
        silu = h * jax.nn.sigmoid(h)
        o_ref[...] = (xres_ref[...].astype(jnp.float32) + silu).astype(o_ref.dtype)


@functools.partial(jax.jit, static_argnames=("tm", "tn", "tk", "weight_dtype"))
def resblock(x, weight, bias, *, tm=None, tn=None, tk=None,
             weight_dtype=jnp.bfloat16):
    """y = x + SiLU(x @ weight.T + bias).

    x      : (..., H)
    weight : (H, H)  PyTorch nn.Linear layout (out_features, in_features)
    bias   : (H,)
    """
    orig_shape = x.shape
    H = orig_shape[-1]
    x2 = x.reshape(-1, H)
    M = x2.shape[0]
    assert weight.shape == (H, H) and bias.shape == (H,)

    # In production the weight should be stored pre-cast at model load; this is
    # a cheap elementwise convert (no transpose) and a no-op if already cast.
    w = weight.astype(weight_dtype)
    b2 = bias.reshape(1, H)

    sub = _SUBLANE.get(x2.dtype.itemsize, 8)
    if tm is None:
        tm = min(_round_up(M, sub), 256)
    if tn is None:
        tn = _pick_h_tile(H)
    if tk is None:
        tk = _pick_h_tile(H)

    xbytes = x2.dtype.itemsize
    wbytes = jnp.dtype(weight_dtype).itemsize
    fused = (tn == H and tk == H and (H * H * wbytes) <= (8 << 20))

    cost = pl.CostEstimate(
        flops=2 * M * H * H,
        transcendentals=M * H,   # one sigmoid exp per output element
        bytes_accessed=(H * H * wbytes                       # weight stream
                        + (2 if fused else 3) * M * H * xbytes  # x (+res) + out
                        + H * bias.dtype.itemsize),
    )

    if fused:
        grid = (pl.cdiv(M, tm),)
        out2 = pl.pallas_call(
            _resblock_kernel_fused,
            out_shape=jax.ShapeDtypeStruct((M, H), x2.dtype),
            grid_spec=pltpu.PrefetchScalarGridSpec(
                num_scalar_prefetch=0,
                grid=grid,
                in_specs=[
                    pl.BlockSpec((tm, H), lambda i: (i, 0)),  # x (LHS + residual)
                    pl.BlockSpec((H, H), lambda i: (0, 0)),   # W (out, in)
                    pl.BlockSpec((1, H), lambda i: (0, 0)),   # bias
                ],
                out_specs=pl.BlockSpec((tm, H), lambda i: (i, 0)),
            ),
            compiler_params=pltpu.CompilerParams(
                dimension_semantics=("parallel",),
            ),
            cost_estimate=cost,
        )(x2, w, b2)
    else:
        grid = (pl.cdiv(M, tm), pl.cdiv(H, tn), pl.cdiv(H, tk))
        out2 = pl.pallas_call(
            _resblock_kernel,
            out_shape=jax.ShapeDtypeStruct((M, H), x2.dtype),
            grid_spec=pltpu.PrefetchScalarGridSpec(
                num_scalar_prefetch=0,
                grid=grid,
                in_specs=[
                    pl.BlockSpec((tm, tk), lambda i, j, k: (i, k)),  # x, LHS
                    pl.BlockSpec((tn, tk), lambda i, j, k: (j, k)),  # W (out, in)
                    pl.BlockSpec((1, tn), lambda i, j, k: (0, j)),   # bias
                    pl.BlockSpec((tm, tn), lambda i, j, k: (i, j)),  # x, residual
                ],
                out_specs=pl.BlockSpec((tm, tn), lambda i, j, k: (i, j)),
                scratch_shapes=[pltpu.VMEM((tm, tn), jnp.float32)],
            ),
            compiler_params=pltpu.CompilerParams(
                dimension_semantics=("parallel", "parallel", "arbitrary"),
            ),
            cost_estimate=cost,
        )(x2, w, b2, x2)

    return out2.reshape(orig_shape)


def resblock_ref(x, weight, bias):
    h = jnp.einsum("...i,oi->...o", x, weight,
                   precision=lax.Precision.HIGHEST) + bias
    return x + h * jax.nn.sigmoid(h)


def _bf16_ref(x, weight, bias):
    xq = x.astype(jnp.bfloat16).astype(jnp.float32)
    wq = weight.astype(jnp.bfloat16).astype(jnp.float32)
    hq = jnp.einsum("...i,oi->...o", xq, wq,
                    precision=lax.Precision.HIGHEST) + bias
    return x + hq * jax.nn.sigmoid(hq)


if __name__ == "__main__":
    key = jax.random.PRNGKey(0)
    kx, kb, kw, kx2, kb2, kw2 = jax.random.split(key, 6)

    # Small shapes consistent with the module: batch=2, seq=8, hidden=128.
    batch, seq, hidden = 2, 8, 128
    x = jax.random.normal(kx, (batch, seq, hidden), dtype=jnp.float32)
    bound = 1.0 / (hidden ** 0.5)
    bias = jax.random.uniform(kb, (hidden,), dtype=jnp.float32,
                              minval=-bound, maxval=bound)

    # 1) Module-exact case: ResBlock zero-initializes the linear weight, so the
    #    matmul contributes nothing and the check is precision-exact.
    w_zero = jnp.zeros((hidden, hidden), dtype=jnp.float32)
    out = jax.block_until_ready(resblock(x, w_zero, bias))
    ref = resblock_ref(x, w_zero, bias)
    assert jnp.allclose(out, ref, atol=1e-5, rtol=1e-5), "zero-weight mismatch"

    # 2) Random weight, f32 weight path (fused kernel), loose tolerance so the
    #    check is agnostic to the MXU's default f32 precision mode.
    w_rand = jax.random.normal(kw, (hidden, hidden), dtype=jnp.float32) * (hidden ** -0.5)
    out_f32 = jax.block_until_ready(
        resblock(x, w_rand, bias, weight_dtype=jnp.float32))
    ref_f32 = resblock_ref(x, w_rand, bias)
    assert jnp.allclose(out_f32, ref_f32, atol=2e-2, rtol=2e-2), "f32 mismatch"

    # 3) Default bf16 weight-streaming path (fused kernel): tight check against
    #    a reference that applies the same bf16 rounding to the matmul operands
    #    (residual add stays f32, exactly like the kernel).
    out_bf16 = jax.block_until_ready(resblock(x, w_rand, bias))
    ref_bf16 = _bf16_ref(x, w_rand, bias)
    assert jnp.allclose(out_bf16, ref_bf16, atol=2e-3, rtol=2e-3), "bf16 mismatch"

    # 4) Exercise the GENERAL 3-D-grid kernel (multiple n/k tiles) with a
    #    slightly larger hidden size and forced 128-wide tiles.
    hidden2 = 256
    xg = jax.random.normal(kx2, (batch, seq, hidden2), dtype=jnp.float32)
    bg = jax.random.uniform(kb2, (hidden2,), dtype=jnp.float32,
                            minval=-1.0 / (hidden2 ** 0.5),
                            maxval=1.0 / (hidden2 ** 0.5))
    wg = jax.random.normal(kw2, (hidden2, hidden2), dtype=jnp.float32) * (hidden2 ** -0.5)
    out_g = jax.block_until_ready(resblock(xg, wg, bg, tn=128, tk=128))
    ref_g = _bf16_ref(xg, wg, bg)
    assert jnp.allclose(out_g, ref_g, atol=2e-3, rtol=2e-3), "general-path mismatch"

    print("KERNEL_OK")
</pallas_src>

<mosaic_0001>
module attributes {stable_mosaic.version = 11 : i64} {
  func.func @_resblock_kernel_fused(%arg0: i32, %arg1: memref<16x128xf32, #tpu.memory_space<vmem>>, %arg2: memref<128x128xbf16, #tpu.memory_space<vmem>>, %arg3: memref<1x128xf32, #tpu.memory_space<vmem>>, %arg4: memref<16x128xf32, #tpu.memory_space<vmem>>) attributes {dimension_semantics = [#tpu.dimension_semantics<parallel>], iteration_bounds = array<i64: 1>, scalar_prefetch = 0 : i64, scratch_operands = 0 : i64, tpu.core_type = #tpu.core_type<tc>, window_params = [{transform_indices = @transform_0, window_bounds = array<i64: 16, 128>}, {pipeline_mode = #tpu.pipeline_mode<synchronous>, transform_indices = @transform_1, window_bounds = array<i64: 128, 128>}, {pipeline_mode = #tpu.pipeline_mode<synchronous>, transform_indices = @transform_2, window_bounds = array<i64: 1, 128>}, {transform_indices = @transform_3, window_bounds = array<i64: 16, 128>}]} {
    %c0 = arith.constant 0 : index
    %c0_0 = arith.constant 0 : index
    %0 = vector.load %arg1[%c0, %c0_0] : memref<16x128xf32, #tpu.memory_space<vmem>>, vector<16x128xf32>
    %c0_1 = arith.constant 0 : index
    %c0_2 = arith.constant 0 : index
    %1 = vector.load %arg2[%c0_1, %c0_2] : memref<128x128xbf16, #tpu.memory_space<vmem>>, vector<128x128xbf16>
    %2 = arith.truncf %0 : vector<16x128xf32> to vector<16x128xbf16>
    %cst = arith.constant dense<0.000000e+00> : vector<16x128xf32>
    %3 = tpu.matmul %2, %1, %cst {dimension_numbers = #tpu.dot_dimension_numbers<[1], [1], [0], [0], [0, 0, 1, 0], [], []>} : vector<16x128xbf16>, vector<128x128xbf16>, vector<16x128xf32> -> vector<16x128xf32>
    %c0_3 = arith.constant 0 : index
    %c0_4 = arith.constant 0 : index
    %4 = vector.load %arg3[%c0_3, %c0_4] : memref<1x128xf32, #tpu.memory_space<vmem>>, vector<1x128xf32>
    %5 = vector.broadcast %4 : vector<1x128xf32> to vector<16x128xf32>
    %6 = arith.addf %3, %5 : vector<16x128xf32>
    %7 = arith.negf %6 : vector<16x128xf32>
    %8 = math.exp %7 : vector<16x128xf32>
    %cst_5 = arith.constant 1.000000e+00 : f32
    %9 = vector.broadcast %cst_5 : f32 to vector<16x128xf32>
    %10 = arith.addf %9, %8 : vector<16x128xf32>
    %11 = arith.divf %9, %10 : vector<16x128xf32>
    %12 = arith.mulf %6, %11 : vector<16x128xf32>
    %13 = arith.addf %0, %12 : vector<16x128xf32>
    %c0_6 = arith.constant 0 : index
    %c0_7 = arith.constant 0 : index
    %14 = vector.load %arg4[%c0_6, %c0_7] : memref<16x128xf32, #tpu.memory_space<vmem>>, vector<16x128xf32>
    tpu.vector_store %arg4[%c0_6, %c0_7], %13 {strides = array<i32>} : memref<16x128xf32, #tpu.memory_space<vmem>>, vector<16x128xf32>,
    return
  }
  func.func @transform_0(%arg0: i32) -> (i32, i32) {
    %c0_i32 = arith.constant 0 : i32
    %c0_i32_0 = arith.constant 0 : i32
    return %arg0, %c0_i32 : i32, i32
  }
  func.func @transform_1(%arg0: i32) -> (i32, i32) {
    %c0_i32 = arith.constant 0 : i32
    %c0_i32_0 = arith.constant 0 : i32
    %c0_i32_1 = arith.constant 0 : i32
    return %c0_i32, %c0_i32_0 : i32, i32
  }
  func.func @transform_2(%arg0: i32) -> (i32, i32) {
    %c0_i32 = arith.constant 0 : i32
    %c0_i32_0 = arith.constant 0 : i32
    %c0_i32_1 = arith.constant 0 : i32
    return %c0_i32, %c0_i32_0 : i32, i32
  }
  func.func @transform_3(%arg0: i32) -> (i32, i32) {
    %c0_i32 = arith.constant 0 : i32
    %c0_i32_0 = arith.constant 0 : i32
    return %arg0, %c0_i32 : i32, i32
  }
}

</mosaic_0001>

<llo_original>
// kernel: resblock.1
$region0: #{resblock.1}
  #allocation0 [shape = 'u32[]', space=smem, size = 0x4, offset = 0x4, fixed_abs, tag = 'smem constant byte address 0x4 - core index']
  #allocation1 [shape = 'u32[144,128]{1,0:T(1,128)}', space=vmem, size = 0x12000, scoped, tag = 'internal scratch']
  %s0 = inlined_call_operand.vmem [shape: f32[16,128], index: 0, kind: input, shape index: {}]
  %s1 = inlined_call_operand.vmem [shape: bf16[128,128], index: 1, kind: input, shape index: {}]
  %s2 = inlined_call_operand.vmem [shape: f32[1,128], index: 2, kind: input, shape index: {}]
  %s3 = inlined_call_operand.hbm [shape: f32[16,128], index: 3, kind: output, shape index: {}]
  %s4 = sld [smem:[#allocation0]]
  $region22: #{resblock.1} parent=0
    _
  %s6 = ssub.s32 1, %s4
  %s7 = scalar_select 0, %s6, %s4
  $region1: #{resblock.1} parent=0
    #allocation2 [shape = 'u8[8192]{0}', space=vmem, size = 0x2000, scoped, tag = 'output window, operand 0, single buffered']
    #allocation3 [shape = 's32[1]{0}', space=sflag, size = 0x4, scoped, tag = 'scoped memory for resblock.1']
    %8 = vsyncpa [#allocation3], 0
    // Predicated region
    $region2: #{resblock.1} parent=1 // pred_check
      _
    $region3: #{resblock.1} parent=1 // pred_check_branch
      %10 = sbr.rel (0) target = $region5
    $region4: #{resblock.1} parent=1 // pred_region
      _
    $region5: #{resblock.1} parent=1 // pred_fallthru
      _
    // Predicated region
    $region6: #{resblock.1} parent=1 // pred_check
      _
    $region7: #{resblock.1} parent=1 // pred_check_branch
      %12 = sbr.rel (0) target = $region9
    $region8: #{resblock.1} parent=1 // pred_region
      _
    $region9: #{resblock.1} parent=1 // pred_fallthru
      _
    // Predicated region
    $region10: #{resblock.1} parent=1 // pred_check
      _
    $region11: #{resblock.1} parent=1 // pred_check_branch
      %14 = sbr.rel (0) target = $region13
    $region12: #{resblock.1} parent=1 // pred_region
      _
    $region13: #{resblock.1} parent=1 // pred_fallthru
      _
    %v16 = vld [vmem:[%s0] sm:$0xff]
    %v17 = vld [vmem:[%s0 + $0x8] sm:$0xff]
    %v18 = vld [vmem:[%s1] sm:$0xf]
    %v19 = vld [vmem:[%s1 + $0x4] sm:$0xf]
    %v20 = vld [vmem:[%s1 + $0x8] sm:$0xf]
    %v21 = vld [vmem:[%s1 + $0xc] sm:$0xf]
    %v22 = vld [vmem:[%s1 + $0x10] sm:$0xf]
    %v23 = vld [vmem:[%s1 + $0x14] sm:$0xf]
    %v24 = vld [vmem:[%s1 + $0x18] sm:$0xf]
    %v25 = vld [vmem:[%s1 + $0x1c] sm:$0xf]
    %v26 = vld [vmem:[%s1 + $0x20] sm:$0xf]
    %v27 = vld [vmem:[%s1 + $0x24] sm:$0xf]
    %v28 = vld [vmem:[%s1 + $0x28] sm:$0xf]
    %v29 = vld [vmem:[%s1 + $0x2c] sm:$0xf]
    %v30 = vld [vmem:[%s1 + $0x30] sm:$0xf]
    %v31 = vld [vmem:[%s1 + $0x34] sm:$0xf]
    %v32 = vld [vmem:[%s1 + $0x38] sm:$0xf]
    %v33 = vld [vmem:[%s1 + $0x3c] sm:$0xf]
    %v34 = vpack.c.bf16 %v17, %v16
    %v35 = vld [vmem:[%s2] sm:$0x1]
    %v37 = vlaneseq
    %v38 = vshrl.u32 %v37, 7
    %v39 = vsub.s32 0, %v38
    %v40 = vrot.slane %v35, %v39
    %v58 = vunpack.c.l.b16 %v18
    %v59 = vunpack.c.l.b16 %v19
    %v60 = vunpack.c.l.b16 %v20
    %v61 = vunpack.c.l.b16 %v21
    %v62 = vunpack.c.l.b16 %v22
    %v63 = vunpack.c.l.b16 %v23
    %v64 = vunpack.c.l.b16 %v24
    %v65 = vunpack.c.l.b16 %v25
    %v66 = vunpack.c.l.b16 %v26
    %v67 = vunpack.c.l.b16 %v27
    %v68 = vunpack.c.l.b16 %v28
    %v69 = vunpack.c.l.b16 %v29
    %v70 = vunpack.c.l.b16 %v30
    %v71 = vunpack.c.l.b16 %v31
    %v72 = vunpack.c.l.b16 %v32
    %v73 = vunpack.c.l.b16 %v33
    %v74 = vpack.c.b16 %v59, %v58
    %v75 = vpack.c.b16 %v61, %v60
    %v76 = vpack.c.b16 %v63, %v62
    %v77 = vpack.c.b16 %v65, %v64
    %v78 = vpack.c.b16 %v67, %v66
    %v79 = vpack.c.b16 %v69, %v68
    %v80 = vpack.c.b16 %v71, %v70
    %v81 = vpack.c.b16 %v73, %v72
    %90 = vmatprep.subr.bf16.mxu0 0
    %91 = vmatpush1.bf16.xpose.msra.mxu0 %v81
    %92 = vmatprep.subr.bf16.mxu0 0
    %93 = vmatpush1.bf16.xpose.msra.mxu0 %v80
    %94 = vmatprep.subr.bf16.mxu0 0
    %95 = vmatpush1.bf16.xpose.msra.mxu0 %v79
    %96 = vmatprep.subr.bf16.mxu0 0
    %97 = vmatpush1.bf16.xpose.msra.mxu0 %v78
    %98 = vmatprep.subr.bf16.mxu0 0
    %99 = vmatpush1.bf16.xpose.msra.mxu0 %v77
    %100 = vmatprep.subr.bf16.mxu0 0
    %101 = vmatpush1.bf16.xpose.msra.mxu0 %v76
    %102 = vmatprep.subr.bf16.mxu0 0
    %103 = vmatpush1.bf16.xpose.msra.mxu0 %v75
    %104 = vmatprep.subr.bf16.mxu0 0
    %105 = vmatpush1.bf16.xpose.msra.mxu0 %v74
    %106 = vmatprep.subr.bf16.mxu0 0
    %107 = vmatpush2.bf16.xpose.msra.mxu0 0
    %108 = vmatprep.subr.bf16.mxu0 0
    %109 = vmatpush2.bf16.xpose.msra.mxu0 0
    %110 = vmatprep.subr.bf16.mxu0 0
    %111 = vmatpush2.bf16.xpose.msra.mxu0 0
    %112 = vmatprep.subr.bf16.mxu0 0
    %113 = vmatpush2.bf16.xpose.msra.mxu0 0
    %114 = vmatprep.subr.bf16.mxu0 0
    %115 = vmatpush2.bf16.xpose.msra.mxu0 0
    %116 = vmatprep.subr.bf16.mxu0 0
    %117 = vmatpush2.bf16.xpose.msra.mxu0 0
    %118 = vmatprep.subr.bf16.mxu0 0
    %119 = vmatpush2.bf16.xpose.msra.mxu0 0
    %120 = vmatprep.subr.bf16.mxu0 0
    %121 = vmatpush2.bf16.xpose.msra.mxu0 0
    %122 = vmatprep.mubr.bf16.mxu0 0
    %123 = vmatmul.mubr.bf16.gmra.mxu0 %v34
    %v124 = vpop.f32.mrf.mxu0
    %v125 = vadd.f32 %v40, %v124
    %v126 = vpop.f32.mrf.mxu0
    %v127 = vpop.f32.mrf.mxu0
    %v128 = vadd.f32 %v40, %v127
    %v129 = vpop.f32.mrf.mxu0
    %130 = vdwg.mxu0
    %v131 = vxor.u32 %v125, 2147483648
    %v132 = vxor.u32 %v128, 2147483648
    %v133 = vmul.f32 %v131, 1.442695
    %v134 = vpow.pop %v133
    %v135 = vmul.f32 %v132, 1.442695
    %v136 = vpow.pop %v135
    %v137 = vadd.f32 %v134, 1.0
    %v138 = vadd.f32 %v136, 1.0
    %v139 = vrcp.pop %v137
    %v140 = vmul.f32 1.0, %v139
    %v141 = vrcp.pop %v138
    %v142 = vmul.f32 1.0, %v141
    %v143 = vmul.f32 %v125, %v140
    %v144 = vmul.f32 %v128, %v142
    %v145 = vadd.f32 %v16, %v143
    %v146 = vadd.f32 %v17, %v144
    %147 = vst [vmem:[#allocation2] sm:$0xff] %v145
    %148 = vst [vmem:[#allocation2 + $0x8] sm:$0xff] %v146
    // Predicated region
    $region14: #{resblock.1} parent=1 // pred_check
      _
    $region15: #{resblock.1} parent=1 // pred_check_branch
      %150 = sbr.rel (0) target = $region17
    $region16: #{resblock.1} parent=1 // pred_region
      %s152 = ssub.s32 256, 256
      %153 = vsyncadd [#allocation3], %s152
      %s154 = sshll.u32 [#allocation2], 4
      %s155 = int_to_ptr.vmem [resolvable:$true] %s154
      %160 = dma.vmem_to_hbm [thread:$0]  %s155, 256, %s3, [#allocation3], 128, 128, 8
    $region17: #{resblock.1} parent=1 // pred_fallthru
      _
    // Predicated region
    $region18: #{resblock.1} parent=1 // pred_check
      _
    $region19: #{resblock.1} parent=1 // pred_check_branch
      %162 = sbr.rel (0) target = $region21
    $region20: #{resblock.1} parent=1 // pred_region
      %163 = dma.done [#allocation3], 256
    $region21: #{resblock.1} parent=1 // pred_fallthru
      _
    %164 = vsyncpa [#allocation3], 1

</llo_original>
